<compile_context>
chip_gen: v5e
topology: v5e:2x2
jax: 0.10.0
libtpu: 0.0.40
codegen_flags: <defaults>
</compile_context>

<pallas_src>
import functools

import jax
import jax.numpy as jnp
from jax import lax
from jax.experimental import pallas as pl
from jax.experimental.pallas import tpu as pltpu


def _cdiv(a, b):
    return -(-a // b)


def _round_up(a, b):
    return _cdiv(a, b) * b


def _integer_pow(base, n):
    """base ** n for a static positive int n (exponentiation by squaring; VPU only)."""
    result = None
    sq = base
    while True:
        if n & 1:
            result = sq if result is None else result * sq
        n >>= 1
        if n == 0:
            return result
        sq = sq * sq


def _focal_weight(base, gamma):
    """(1 - pt) ** gamma for a static scalar gamma, avoiding EUP pow when possible."""
    g = float(gamma)
    if g == 0.0:
        return jnp.ones_like(base)
    if g.is_integer() and 0 < g <= 32:
        return _integer_pow(base, int(g))          # pure VPU multiplies
    return jnp.power(base, g)                      # non-integer gamma: EUP fallback


def _asl_tile_kernel(x_ref, y_ref, part_ref, *, gamma_neg, gamma_pos, clip, eps,
                     tile_rows, lane_width, valid_rows, valid_rem, mask_tail,
                     approx_recip):
    x = x_ref[...].astype(jnp.float32)
    is_pos = y_ref[...] != 0            # native-dtype mask; no f32 upcast of y

    # sigmoid via exp + reciprocal.  The -30 floor only touches logits whose loss
    # is already saturated (post eps-clamp) and keeps exp(-x) finite in f32.
    e = jnp.exp(-jnp.maximum(x, -30.0))            # EUP exp
    denom = 1.0 + e
    if approx_recip:
        xs_pos = pl.reciprocal(denom, approx=True)  # EUP vrcp, near-free
    else:
        xs_pos = 1.0 / denom
    xs_neg = e * xs_pos                             # e/(1+e): no cancellation
    if clip is not None and clip > 0:
        xs_neg = jnp.minimum(xs_neg + clip, 1.0)    # (xs_neg + clip).clamp(max=1)

    # Binary targets: one select + ONE log replaces y*log(p_pos) + (1-y)*log(p_neg).
    prob = jnp.where(is_pos, xs_pos, xs_neg)        # == pt of the torch code
    loss = jnp.log(jnp.clip(prob, eps, 1.0 - eps))  # module clamps min AND max

    if gamma_neg > 0 or gamma_pos > 0:
        base = 1.0 - prob
        if gamma_pos == gamma_neg:
            w = _focal_weight(base, gamma_pos)
        else:
            w = jnp.where(is_pos,
                          _focal_weight(base, gamma_pos),
                          _focal_weight(base, gamma_neg))
        loss = loss * w

    if mask_tail:
        # Zero the flattened-and-padded tail exactly (only emitted when padding exists).
        row = pl.program_id(0) * tile_rows + lax.broadcasted_iota(
            jnp.int32, loss.shape, 0)
        lane = lax.broadcasted_iota(jnp.int32, loss.shape, 1)
        valid = (row < valid_rows) | ((row == valid_rows) & (lane < valid_rem))
        loss = jnp.where(valid, loss, 0.0)

    # Reduce this tile to an (8, lane_width) partial using VPU adds only (the
    # leading reshape axis groups whole sublane slabs).  The single cross-lane
    # reduce happens once, outside the kernel, on the tiny partials.
    part_ref[...] = jnp.sum(loss.reshape(tile_rows // 8, 8, lane_width), axis=0)


_ROW_ALIGN = 32        # packed-sublane multiple for f32(8) / bf16(16) / int8,bool(32)


def _vmem_capacity_bytes():
    try:
        return int(pltpu.get_tpu_info().vmem_capacity_bytes)
    except Exception:
        return 64 << 20  # conservative default (v7x-class per-TensorCore VMEM)


def asymmetric_loss(x, y, *, gamma_neg=4.0, gamma_pos=1.0, clip=0.05, eps=1e-8,
                    lane_width=512, max_rows_per_tile=None, approx_reciprocal=True):
    """Pallas ASL forward: returns the scalar -sum(loss) (matches the torch module).

    `y` is assumed binarized ({0,1}).  It is streamed in its native dtype (pass
    bf16 / int8 / bool to cut HBM traffic) and only used as a mask.
    """
    assert x.shape == y.shape, (x.shape, y.shape)
    total = int(x.size)
    w = int(lane_width)
    assert w % 128 == 0, "lane_width must be a multiple of 128"

    # ---- generation-aware budgets (bound DMA tiles AND the f32 temporaries) ----
    vmem_cap = _vmem_capacity_bytes()
    if vmem_cap <= (64 << 20):                  # v7x-class: 64 MiB VMEM per TC
        max_f32_tile_bytes = 4 << 20
        vmem_limit = 48 << 20
    else:                                       # v5e / v6e: 128 MiB VMEM
        max_f32_tile_bytes = 8 << 20
        vmem_limit = 80 << 20
    vmem_limit = min(vmem_limit, max(32 << 20, vmem_cap - (16 << 20)))

    rows_needed = _cdiv(total, w)
    budget_rows = max(_ROW_ALIGN,
                      (max_f32_tile_bytes // (4 * w)) // _ROW_ALIGN * _ROW_ALIGN)
    if max_rows_per_tile is not None:
        budget_rows = min(budget_rows,
                          max(_ROW_ALIGN, max_rows_per_tile // _ROW_ALIGN * _ROW_ALIGN))
    if rows_needed >= 2 * _ROW_ALIGN:
        # Guarantee >= 2 grid tiles so v7x can shard the parallel axis over both TCs.
        budget_rows = min(budget_rows, _round_up(_cdiv(rows_needed, 2), _ROW_ALIGN))
    tile_rows = min(budget_rows, _round_up(rows_needed, _ROW_ALIGN))
    num_tiles = _cdiv(rows_needed, tile_rows)
    padded_rows = num_tiles * tile_rows
    pad_elems = padded_rows * w - total

    # Lane-dense slab: a free reshape when no padding is needed; otherwise pad
    # with confident true negatives (x=-20, y=0) that the kernel also masks.
    xf = x.reshape(-1)
    yf = y.reshape(-1)
    if pad_elems > 0:
        xf = jnp.concatenate([xf, jnp.full((pad_elems,), -20.0, dtype=xf.dtype)])
        yf = jnp.concatenate([yf, jnp.zeros((pad_elems,), dtype=yf.dtype)])
    x2 = xf.reshape(padded_rows, w)
    y2 = yf.reshape(padded_rows, w)

    kernel = functools.partial(
        _asl_tile_kernel,
        gamma_neg=float(gamma_neg), gamma_pos=float(gamma_pos),
        clip=None if clip is None else float(clip), eps=float(eps),
        tile_rows=tile_rows, lane_width=w,
        valid_rows=total // w, valid_rem=total % w,
        mask_tail=pad_elems > 0, approx_recip=bool(approx_reciprocal))

    partials = pl.pallas_call(
        kernel,
        out_shape=jax.ShapeDtypeStruct((num_tiles, 8, w), jnp.float32),
        grid=(num_tiles,),
        in_specs=[pl.BlockSpec((tile_rows, w), lambda i: (i, 0)),
                  pl.BlockSpec((tile_rows, w), lambda i: (i, 0))],
        out_specs=pl.BlockSpec((None, 8, w), lambda i: (i, 0, 0)),
        compiler_params=pltpu.CompilerParams(
            # Tiles are independent: Mosaic may shard the grid across both v7x
            # TensorCores; v5e/v6e (1 TC) are unaffected.  If a v7x profile shows
            # one TC active, switch to dimension_semantics=(pltpu.CORE_PARALLEL,).
            dimension_semantics=("parallel",),
            vmem_limit_bytes=int(vmem_limit)),
    )(x2, y2)

    # Tiny final cross-lane reduce + negate, in XLA.
    return -jnp.sum(partials)


def asymmetric_loss_ref(x, y, gamma_neg=4.0, gamma_pos=1.0, clip=0.05, eps=1e-8):
    """Pure-JAX reference mirroring the PyTorch forward exactly."""
    x = x.astype(jnp.float32)
    y = y.astype(jnp.float32)
    xs_pos = jax.nn.sigmoid(x)
    xs_neg = 1.0 - xs_pos
    if clip is not None and clip > 0:
        xs_neg = jnp.minimum(xs_neg + clip, 1.0)
    los_pos = y * jnp.log(jnp.clip(xs_pos, eps, 1.0 - eps))
    los_neg = (1.0 - y) * jnp.log(jnp.clip(xs_neg, eps, 1.0 - eps))
    loss = los_pos + los_neg
    if gamma_neg > 0 or gamma_pos > 0:
        pt = xs_pos * y + xs_neg * (1.0 - y)
        gamma = gamma_pos * y + gamma_neg * (1.0 - y)
        loss = loss * jnp.power(1.0 - pt, gamma)
    return -jnp.sum(loss)


if __name__ == "__main__":
    key = jax.random.PRNGKey(0)
    k1, k2, k3, k4 = jax.random.split(key, 4)

    # 1) f32 logits / f32 targets, COCO-style class count (80, not a multiple of
    #    128) -> exercises the lane-dense flatten + padded/masked tail path.
    B, C = 64, 80
    x = jax.random.normal(k1, (B, C), dtype=jnp.float32)
    y = (jax.random.uniform(k2, (B, C)) < 0.3).astype(jnp.float32)
    ref = asymmetric_loss_ref(x, y)

    out_exact = jax.block_until_ready(asymmetric_loss(x, y, approx_reciprocal=False))
    assert jnp.allclose(out_exact, ref, rtol=1e-4, atol=1e-2), (out_exact, ref)

    out = jax.block_until_ready(asymmetric_loss(x, y))   # approx-reciprocal path
    assert jnp.allclose(out, ref, rtol=1e-2, atol=1e-2), (out, ref)

    # 2) bf16 logits + bf16 targets: narrow-dtype streaming, no wrapper casts.
    x_bf = x.astype(jnp.bfloat16)
    y_bf = y.astype(jnp.bfloat16)
    ref_bf = asymmetric_loss_ref(x_bf.astype(jnp.float32), y)
    out_bf = jax.block_until_ready(asymmetric_loss(x_bf, y_bf))
    assert jnp.allclose(out_bf, ref_bf, rtol=1e-2, atol=1e-2), (out_bf, ref_bf)

    # 3) Larger shape with int8 targets: multi-tile "parallel" grid path, both
    #    with the default tiling (2 tiles) and a forced 4-tile grid.
    B2, C2 = 256, 256
    x2 = jax.random.normal(k3, (B2, C2), dtype=jnp.float32)
    y2 = (jax.random.uniform(k4, (B2, C2)) < 0.25).astype(jnp.int8)
    ref2 = asymmetric_loss_ref(x2, y2.astype(jnp.float32))
    out2 = jax.block_until_ready(asymmetric_loss(x2, y2))
    out2_tiled = jax.block_until_ready(asymmetric_loss(x2, y2, max_rows_per_tile=32))
    assert jnp.allclose(out2, ref2, rtol=1e-2, atol=1e-2), (out2, ref2)
    assert jnp.allclose(out2_tiled, ref2, rtol=1e-2, atol=1e-2), (out2_tiled, ref2)

    print("KERNEL_OK")
</pallas_src>

<mosaic_0001>
module attributes {stable_mosaic.version = 11 : i64} {
  func.func @_asl_tile_kernel(%arg0: i32, %arg1: memref<32x512xf32, #tpu.memory_space<vmem>>, %arg2: memref<32x512xf32, #tpu.memory_space<vmem>>, %arg3: memref<1x8x512xf32, #tpu.memory_space<vmem>>) attributes {dimension_semantics = [#tpu.dimension_semantics<parallel>], iteration_bounds = array<i64: 1>, scalar_prefetch = 0 : i64, scratch_operands = 0 : i64, tpu.core_type = #tpu.core_type<tc>, window_params = [{transform_indices = @transform_0, window_bounds = array<i64: 32, 512>}, {transform_indices = @transform_1, window_bounds = array<i64: 32, 512>}, {transform_indices = @transform_2, window_bounds = array<i64: 1, 8, 512>}]} {
    %c0 = arith.constant 0 : index
    %c0_0 = arith.constant 0 : index
    %0 = vector.load %arg1[%c0, %c0_0] : memref<32x512xf32, #tpu.memory_space<vmem>>, vector<32x512xf32>
    %c0_1 = arith.constant 0 : index
    %c0_2 = arith.constant 0 : index
    %1 = vector.load %arg2[%c0_1, %c0_2] : memref<32x512xf32, #tpu.memory_space<vmem>>, vector<32x512xf32>
    %cst = arith.constant 0.000000e+00 : f32
    %2 = vector.broadcast %cst : f32 to vector<32x512xf32>
    %3 = arith.cmpf one, %1, %2 : vector<32x512xf32>
    %cst_3 = arith.constant -3.000000e+01 : f32
    %4 = vector.broadcast %cst_3 : f32 to vector<32x512xf32>
    %5 = arith.maximumf %0, %4 : vector<32x512xf32>
    %cst_4 = arith.constant 0.000000e+00 : f32
    %6 = vector.broadcast %cst_4 : f32 to vector<32x512xf32>
    %7 = arith.subf %6, %5 : vector<32x512xf32>
    %8 = math.exp %7 : vector<32x512xf32>
    %cst_5 = arith.constant 1.000000e+00 : f32
    %9 = vector.broadcast %cst_5 : f32 to vector<32x512xf32>
    %10 = arith.addf %9, %8 : vector<32x512xf32>
    %cst_6 = arith.constant 1.000000e+00 : f32
    %11 = vector.broadcast %cst_6 : f32 to vector<32x512xf32>
    %12 = arith.divf %11, %10 : vector<32x512xf32>
    %13 = arith.mulf %8, %12 : vector<32x512xf32>
    %cst_7 = arith.constant 5.000000e-02 : f32
    %14 = vector.broadcast %cst_7 : f32 to vector<32x512xf32>
    %15 = arith.addf %13, %14 : vector<32x512xf32>
    %cst_8 = arith.constant 1.000000e+00 : f32
    %16 = vector.broadcast %cst_8 : f32 to vector<32x512xf32>
    %17 = arith.minimumf %15, %16 : vector<32x512xf32>
    %18 = arith.select %3, %12, %17 : vector<32x512xi1>, vector<32x512xf32>
    %cst_9 = arith.constant 9.99999993E-9 : f32
    %cst_10 = arith.constant 1.000000e+00 : f32
    %19 = vector.broadcast %cst_9 : f32 to vector<32x512xf32>
    %20 = arith.maximumf %19, %18 : vector<32x512xf32>
    %21 = vector.broadcast %cst_10 : f32 to vector<32x512xf32>
    %22 = arith.minimumf %21, %20 : vector<32x512xf32>
    %23 = math.log %22 : vector<32x512xf32>
    %cst_11 = arith.constant 1.000000e+00 : f32
    %24 = vector.broadcast %cst_11 : f32 to vector<32x512xf32>
    %25 = arith.subf %24, %18 : vector<32x512xf32>
    %26 = arith.mulf %25, %25 : vector<32x512xf32>
    %27 = arith.mulf %26, %26 : vector<32x512xf32>
    %28 = arith.select %3, %25, %27 : vector<32x512xi1>, vector<32x512xf32>
    %29 = arith.mulf %23, %28 : vector<32x512xf32>
    %c32_i32 = arith.constant 32 : i32
    %30 = arith.muli %arg0, %c32_i32 : i32
    %31 = tpu.iota {dimensions = array<i32: 0>} : vector<32x512xi32>
    %32 = vector.broadcast %30 : i32 to vector<32x512xi32>
    %33 = arith.addi %32, %31 : vector<32x512xi32>
    %34 = tpu.iota {dimensions = array<i32: 1>} : vector<32x512xi32>
    %c10_i32 = arith.constant 10 : i32
    %35 = vector.broadcast %c10_i32 : i32 to vector<32x512xi32>
    %36 = arith.cmpi slt, %33, %35 : vector<32x512xi32>
    %c10_i32_12 = arith.constant 10 : i32
    %37 = vector.broadcast %c10_i32_12 : i32 to vector<32x512xi32>
    %38 = arith.cmpi eq, %33, %37 : vector<32x512xi32>
    %c0_i32 = arith.constant 0 : i32
    %39 = vector.broadcast %c0_i32 : i32 to vector<32x512xi32>
    %40 = arith.cmpi slt, %34, %39 : vector<32x512xi32>
    %41 = arith.andi %38, %40 : vector<32x512xi1>
    %42 = arith.ori %36, %41 : vector<32x512xi1>
    %cst_13 = arith.constant 0.000000e+00 : f32
    %43 = vector.broadcast %cst_13 : f32 to vector<32x512xf32>
    %44 = arith.select %42, %29, %43 : vector<32x512xi1>, vector<32x512xf32>
    %45 = vector.shape_cast %44 : vector<32x512xf32> to vector<4x8x512xf32>
    %cst_14 = arith.constant dense<0.000000e+00> : vector<8x512xf32>
    %46 = vector.multi_reduction <add>, %45, %cst_14 [0] : vector<4x8x512xf32> to vector<8x512xf32>
    %c0_15 = arith.constant 0 : index
    %c0_16 = arith.constant 0 : index
    %c0_17 = arith.constant 0 : index
    %47 = vector.load %arg3[%c0_15, %c0_16, %c0_17] : memref<1x8x512xf32, #tpu.memory_space<vmem>>, vector<1x8x512xf32>
    %48 = vector.shape_cast %47 : vector<1x8x512xf32> to vector<8x512xf32>
    %49 = vector.shape_cast %46 : vector<8x512xf32> to vector<1x8x512xf32>
    tpu.vector_store %arg3[%c0_15, %c0_16, %c0_17], %49 {strides = array<i32>} : memref<1x8x512xf32, #tpu.memory_space<vmem>>, vector<1x8x512xf32>,
    return
  }
  func.func @transform_0(%arg0: i32) -> (i32, i32) {
    %c0_i32 = arith.constant 0 : i32
    %c0_i32_0 = arith.constant 0 : i32
    return %arg0, %c0_i32 : i32, i32
  }
  func.func @transform_1(%arg0: i32) -> (i32, i32) {
    %c0_i32 = arith.constant 0 : i32
    %c0_i32_0 = arith.constant 0 : i32
    return %arg0, %c0_i32 : i32, i32
  }
  func.func @transform_2(%arg0: i32) -> (i32, i32, i32) {
    %c0_i32 = arith.constant 0 : i32
    %c0_i32_0 = arith.constant 0 : i32
    %c0_i32_1 = arith.constant 0 : i32
    return %arg0, %c0_i32, %c0_i32_0 : i32, i32, i32
  }
}

</mosaic_0001>

<llo_original>
// kernel: tpu_custom_call.1
$region0: #{tpu_custom_call.1}
  #allocation0 [shape = 'u32[]', space=smem, size = 0x4, offset = 0x4, fixed_abs, tag = 'smem constant byte address 0x4 - core index']
  #allocation1 [shape = 'u32[72,128]{1,0:T(1,128)}', space=vmem, size = 0x9000, scoped, tag = 'internal scratch']
  %s0 = inlined_call_operand.hbm [shape: f32[32,512], index: 0, kind: input, shape index: {}]
  %s1 = inlined_call_operand.hbm [shape: f32[32,512], index: 1, kind: input, shape index: {}]
  %s2 = inlined_call_operand.hbm [shape: f32[1,8,512], index: 2, kind: output, shape index: {}]
  %s3 = sld [smem:[#allocation0]]
  $region26: #{tpu_custom_call.1} parent=0
    _
  %s5 = ssub.s32 1, %s3
  %s6 = scalar_select 0, %s5, %s3
  $region1: #{tpu_custom_call.1} parent=0
    #allocation2 [shape = 'u8[65536]{0}', space=vmem, size = 0x10000, scoped, tag = 'input window, operand 0, single buffered']
    #allocation3 [shape = 's32[1]{0}', space=sflag, size = 0x4, scoped, tag = 'scoped memory for tpu_custom_call.1']
    #allocation4 [shape = 's32[1]{0}', space=sflag, size = 0x4, scoped, tag = 'scoped memory for tpu_custom_call.1']
    #allocation5 [shape = 'u8[65536]{0}', space=vmem, size = 0x10000, scoped, tag = 'input window, operand 1, single buffered']
    #allocation6 [shape = 's32[1]{0}', space=sflag, size = 0x4, scoped, tag = 'scoped memory for tpu_custom_call.1']
    #allocation7 [shape = 'u8[16384]{0}', space=vmem, size = 0x4000, scoped, tag = 'output window, operand 0, single buffered']
    %7 = vsyncpa [#allocation3], 0
    %8 = vsyncpa [#allocation6], 0
    %9 = vsyncpa [#allocation4], 0
    // Predicated region
    $region2: #{tpu_custom_call.1} parent=1 // pred_check
      _
    $region3: #{tpu_custom_call.1} parent=1 // pred_check_branch
      %11 = sbr.rel (0) target = $region5
    $region4: #{tpu_custom_call.1} parent=1 // pred_region
      %13 = vsyncadd [#allocation3], 0
      %s14 = sshll.u32 %s0, 4
      %s15 = int_to_ptr.hbm [resolvable:$true] %s14
      %s16 = sshll.u32 [#allocation2], 4
      %s17 = int_to_ptr.vmem [resolvable:$true] %s16
      %22 = dma.hbm_to_vmem [thread:$0]  %s15, 2048, %s17, [#allocation3], 512, 512, 32
    $region5: #{tpu_custom_call.1} parent=1 // pred_fallthru
      _
    // Predicated region
    $region6: #{tpu_custom_call.1} parent=1 // pred_check
      _
    $region7: #{tpu_custom_call.1} parent=1 // pred_check_branch
      %24 = sbr.rel (0) target = $region9
    $region8: #{tpu_custom_call.1} parent=1 // pred_region
      %26 = vsyncadd [#allocation6], 0
      %s27 = sshll.u32 %s1, 4
      %s28 = int_to_ptr.hbm [resolvable:$true] %s27
      %s29 = sshll.u32 [#allocation5], 4
      %s30 = int_to_ptr.vmem [resolvable:$true] %s29
      %35 = dma.hbm_to_vmem [thread:$0]  %s28, 2048, %s30, [#allocation6], 512, 512, 32
    $region9: #{tpu_custom_call.1} parent=1 // pred_fallthru
      _
    // Predicated region
    $region10: #{tpu_custom_call.1} parent=1 // pred_check
      _
    $region11: #{tpu_custom_call.1} parent=1 // pred_check_branch
      %37 = sbr.rel (0) target = $region13
    $region12: #{tpu_custom_call.1} parent=1 // pred_region
      %39 = dma.done [#allocation3], 2048
    $region13: #{tpu_custom_call.1} parent=1 // pred_fallthru
      _
    // Predicated region
    $region14: #{tpu_custom_call.1} parent=1 // pred_check
      _
    $region15: #{tpu_custom_call.1} parent=1 // pred_check_branch
      %41 = sbr.rel (0) target = $region17
    $region16: #{tpu_custom_call.1} parent=1 // pred_region
      %43 = dma.done [#allocation6], 2048
    $region17: #{tpu_custom_call.1} parent=1 // pred_fallthru
      _
    %v44 = vld [vmem:[#allocation2] sm:$0xff]
    %v45 = vld [vmem:[#allocation2 + $0x8] sm:$0xff]
    %v46 = vld [vmem:[#allocation2 + $0x10] sm:$0xff]
    %v47 = vld [vmem:[#allocation2 + $0x18] sm:$0xff]
    %v48 = vld [vmem:[#allocation2 + $0x20] sm:$0xff]
    %v49 = vld [vmem:[#allocation2 + $0x28] sm:$0xff]
    %v50 = vld [vmem:[#allocation2 + $0x30] sm:$0xff]
    %v51 = vld [vmem:[#allocation2 + $0x38] sm:$0xff]
    %v52 = vld [vmem:[#allocation2 + $0x40] sm:$0xff]
    %v53 = vld [vmem:[#allocation2 + $0x48] sm:$0xff]
    %v54 = vld [vmem:[#allocation2 + $0x50] sm:$0xff]
    %v55 = vld [vmem:[#allocation2 + $0x58] sm:$0xff]
    %v56 = vld [vmem:[#allocation2 + $0x60] sm:$0xff]
    %v57 = vld [vmem:[#allocation2 + $0x68] sm:$0xff]
    %v58 = vld [vmem:[#allocation2 + $0x70] sm:$0xff]
    %v59 = vld [vmem:[#allocation2 + $0x78] sm:$0xff]
    %v60 = vld [vmem:[#allocation5] sm:$0xff]
    %v61 = vld [vmem:[#allocation5 + $0x8] sm:$0xff]
    %v62 = vld [vmem:[#allocation5 + $0x10] sm:$0xff]
    %v63 = vld [vmem:[#allocation5 + $0x18] sm:$0xff]
    %v64 = vld [vmem:[#allocation5 + $0x20] sm:$0xff]
    %v65 = vld [vmem:[#allocation5 + $0x28] sm:$0xff]
    %v66 = vld [vmem:[#allocation5 + $0x30] sm:$0xff]
    %v67 = vld [vmem:[#allocation5 + $0x38] sm:$0xff]
    %v68 = vld [vmem:[#allocation5 + $0x40] sm:$0xff]
    %v69 = vld [vmem:[#allocation5 + $0x48] sm:$0xff]
    %v70 = vld [vmem:[#allocation5 + $0x50] sm:$0xff]
    %v71 = vld [vmem:[#allocation5 + $0x58] sm:$0xff]
    %v72 = vld [vmem:[#allocation5 + $0x60] sm:$0xff]
    %v73 = vld [vmem:[#allocation5 + $0x68] sm:$0xff]
    %v74 = vld [vmem:[#allocation5 + $0x70] sm:$0xff]
    %v75 = vld [vmem:[#allocation5 + $0x78] sm:$0xff]
    %vm76 = vcmp.ne.f32.partialorder %v60, 0.0
    %vm77 = vcmp.ne.f32.partialorder %v61, 0.0
    %vm78 = vcmp.ne.f32.partialorder %v62, 0.0
    %vm79 = vcmp.ne.f32.partialorder %v63, 0.0
    %vm80 = vcmp.ne.f32.partialorder %v64, 0.0
    %vm81 = vcmp.ne.f32.partialorder %v65, 0.0
    %vm82 = vcmp.ne.f32.partialorder %v66, 0.0
    %vm83 = vcmp.ne.f32.partialorder %v67, 0.0
    %vm84 = vcmp.ne.f32.partialorder %v68, 0.0
    %vm85 = vcmp.ne.f32.partialorder %v69, 0.0
    %vm86 = vcmp.ne.f32.partialorder %v70, 0.0
    %vm87 = vcmp.ne.f32.partialorder %v71, 0.0
    %vm88 = vcmp.ne.f32.partialorder %v72, 0.0
    %vm89 = vcmp.ne.f32.partialorder %v73, 0.0
    %vm90 = vcmp.ne.f32.partialorder %v74, 0.0
    %vm91 = vcmp.ne.f32.partialorder %v75, 0.0
    %v92 = vmax.f32 %v44, -30.0
    %v93 = vmax.f32 %v45, -30.0
    %v94 = vmax.f32 %v46, -30.0
    %v95 = vmax.f32 %v47, -30.0
    %v96 = vmax.f32 %v48, -30.0
    %v97 = vmax.f32 %v49, -30.0
    %v98 = vmax.f32 %v50, -30.0
    %v99 = vmax.f32 %v51, -30.0
    %v100 = vmax.f32 %v52, -30.0
    %v101 = vmax.f32 %v53, -30.0
    %v102 = vmax.f32 %v54, -30.0
    %v103 = vmax.f32 %v55, -30.0
    %v104 = vmax.f32 %v56, -30.0
    %v105 = vmax.f32 %v57, -30.0
    %v106 = vmax.f32 %v58, -30.0
    %v107 = vmax.f32 %v59, -30.0
    %v108 = vsub.f32 0.0, %v92
    %v109 = vsub.f32 0.0, %v93
    %v110 = vsub.f32 0.0, %v94
    %v111 = vsub.f32 0.0, %v95
    %v112 = vsub.f32 0.0, %v96
    %v113 = vsub.f32 0.0, %v97
    %v114 = vsub.f32 0.0, %v98
    %v115 = vsub.f32 0.0, %v99
    %v116 = vsub.f32 0.0, %v100
    %v117 = vsub.f32 0.0, %v101
    %v118 = vsub.f32 0.0, %v102
    %v119 = vsub.f32 0.0, %v103
    %v120 = vsub.f32 0.0, %v104
    %v121 = vsub.f32 0.0, %v105
    %v122 = vsub.f32 0.0, %v106
    %v123 = vsub.f32 0.0, %v107
    %v124 = vmul.f32 %v108, 1.442695
    %v125 = vpow.pop %v124
    %v126 = vmul.f32 %v109, 1.442695
    %v127 = vpow.pop %v126
    %v128 = vmul.f32 %v110, 1.442695
    %v129 = vpow.pop %v128
    %v130 = vmul.f32 %v111, 1.442695
    %v131 = vpow.pop %v130
    %v132 = vmul.f32 %v112, 1.442695
    %v133 = vpow.pop %v132
    %v134 = vmul.f32 %v113, 1.442695
    %v135 = vpow.pop %v134
    %v136 = vmul.f32 %v114, 1.442695
    %v137 = vpow.pop %v136
    %v138 = vmul.f32 %v115, 1.442695
    %v139 = vpow.pop %v138
    %v140 = vmul.f32 %v116, 1.442695
    %v141 = vpow.pop %v140
    %v142 = vmul.f32 %v117, 1.442695
    %v143 = vpow.pop %v142
    %v144 = vmul.f32 %v118, 1.442695
    %v145 = vpow.pop %v144
    %v146 = vmul.f32 %v119, 1.442695
    %v147 = vpow.pop %v146
    %v148 = vmul.f32 %v120, 1.442695
    %v149 = vpow.pop %v148
    %v150 = vmul.f32 %v121, 1.442695
    %v151 = vpow.pop %v150
    %v152 = vmul.f32 %v122, 1.442695
    %v153 = vpow.pop %v152
    %v154 = vmul.f32 %v123, 1.442695
    %v155 = vpow.pop %v154
    %v156 = vadd.f32 %v125, 1.0
    %v157 = vadd.f32 %v127, 1.0
    %v158 = vadd.f32 %v129, 1.0
    %v159 = vadd.f32 %v131, 1.0
    %v160 = vadd.f32 %v133, 1.0
    %v161 = vadd.f32 %v135, 1.0
    %v162 = vadd.f32 %v137, 1.0
    %v163 = vadd.f32 %v139, 1.0
    %v164 = vadd.f32 %v141, 1.0
    %v165 = vadd.f32 %v143, 1.0
    %v166 = vadd.f32 %v145, 1.0
    %v167 = vadd.f32 %v147, 1.0
    %v168 = vadd.f32 %v149, 1.0
    %v169 = vadd.f32 %v151, 1.0
    %v170 = vadd.f32 %v153, 1.0
    %v171 = vadd.f32 %v155, 1.0
    %v172 = vrcp.pop %v156
    %v173 = vmul.f32 %v156, %v172
    %v174 = vsub.f32 1.0, %v173
    %v175 = vmul.f32 %v172, %v174
    %v176 = vadd.f32 %v172, %v175
    %vm177 = vweird.f32 %v156
    %vm178 = vweird.f32 %v172
    %vm179 = vmor %vm177, %vm178
    %v180 = vsel %vm179, %v172, %v176
    %v181 = vand.u32 2147483647, %v156
    %vm182 = vcmp.eq.f32.partialorder %v181, 8.507059e+37
    %v183 = vand.u32 %v156, 2147483648
    %v184 = vor.u32 1.1754944e-38, %v183
    %v185 = vsel %vm182, %v184, %v180
    %v186 = vmul.f32 1.0, %v185
    %v187 = vrcp.pop %v157
    %v188 = vmul.f32 %v157, %v187
    %v189 = vsub.f32 1.0, %v188
    %v190 = vmul.f32 %v187, %v189
    %v191 = vadd.f32 %v187, %v190
    %vm192 = vweird.f32 %v157
    %vm193 = vweird.f32 %v187
    %vm194 = vmor %vm192, %vm193
    %v195 = vsel %vm194, %v187, %v191
    %v196 = vand.u32 2147483647, %v157
    %vm197 = vcmp.eq.f32.partialorder %v196, 8.507059e+37
    %v198 = vand.u32 %v157, 2147483648
    %v199 = vor.u32 1.1754944e-38, %v198
    %v200 = vsel %vm197, %v199, %v195
    %v201 = vmul.f32 1.0, %v200
    %v202 = vrcp.pop %v158
    %v203 = vmul.f32 %v158, %v202
    %v204 = vsub.f32 1.0, %v203
    %v205 = vmul.f32 %v202, %v204
    %v206 = vadd.f32 %v202, %v205
    %vm207 = vweird.f32 %v158
    %vm208 = vweird.f32 %v202
    %vm209 = vmor %vm207, %vm208
    %v210 = vsel %vm209, %v202, %v206
    %v211 = vand.u32 2147483647, %v158
    %vm212 = vcmp.eq.f32.partialorder %v211, 8.507059e+37
    %v213 = vand.u32 %v158, 2147483648
    %v214 = vor.u32 1.1754944e-38, %v213
    %v215 = vsel %vm212, %v214, %v210
    %v216 = vmul.f32 1.0, %v215
    %v217 = vrcp.pop %v159
    %v218 = vmul.f32 %v159, %v217
    %v219 = vsub.f32 1.0, %v218
    %v220 = vmul.f32 %v217, %v219
    %v221 = vadd.f32 %v217, %v220
    %vm222 = vweird.f32 %v159
    %vm223 = vweird.f32 %v217
    %vm224 = vmor %vm222, %vm223
    %v225 = vsel %vm224, %v217, %v221
    %v226 = vand.u32 2147483647, %v159
    %vm227 = vcmp.eq.f32.partialorder %v226, 8.507059e+37
    %v228 = vand.u32 %v159, 2147483648
    %v229 = vor.u32 1.1754944e-38, %v228
    %v230 = vsel %vm227, %v229, %v225
    %v231 = vmul.f32 1.0, %v230
    %v232 = vrcp.pop %v160
    %v233 = vmul.f32 %v160, %v232
    %v234 = vsub.f32 1.0, %v233
    %v235 = vmul.f32 %v232, %v234
    %v236 = vadd.f32 %v232, %v235
    %vm237 = vweird.f32 %v160
    %vm238 = vweird.f32 %v232
    %vm239 = vmor %vm237, %vm238
    %v240 = vsel %vm239, %v232, %v236
    %v241 = vand.u32 2147483647, %v160
    %vm242 = vcmp.eq.f32.partialorder %v241, 8.507059e+37
    %v243 = vand.u32 %v160, 2147483648
    %v244 = vor.u32 1.1754944e-38, %v243
    %v245 = vsel %vm242, %v244, %v240
    %v246 = vmul.f32 1.0, %v245
    %v247 = vrcp.pop %v161
    %v248 = vmul.f32 %v161, %v247
    %v249 = vsub.f32 1.0, %v248
    %v250 = vmul.f32 %v247, %v249
    %v251 = vadd.f32 %v247, %v250
    %vm252 = vweird.f32 %v161
    %vm253 = vweird.f32 %v247
    %vm254 = vmor %vm252, %vm253
    %v255 = vsel %vm254, %v247, %v251
    %v256 = vand.u32 2147483647, %v161
    %vm257 = vcmp.eq.f32.partialorder %v256, 8.507059e+37
    %v258 = vand.u32 %v161, 2147483648
    %v259 = vor.u32 1.1754944e-38, %v258
    %v260 = vsel %vm257, %v259, %v255
    %v261 = vmul.f32 1.0, %v260
    %v262 = vrcp.pop %v162
    %v263 = vmul.f32 %v162, %v262
    %v264 = vsub.f32 1.0, %v263
    %v265 = vmul.f32 %v262, %v264
    %v266 = vadd.f32 %v262, %v265
    %vm267 = vweird.f32 %v162
    %vm268 = vweird.f32 %v262
    %vm269 = vmor %vm267, %vm268
    %v270 = vsel %vm269, %v262, %v266
    %v271 = vand.u32 2147483647, %v162
    %vm272 = vcmp.eq.f32.partialorder %v271, 8.507059e+37
    %v273 = vand.u32 %v162, 2147483648
    %v274 = vor.u32 1.1754944e-38, %v273
    %v275 = vsel %vm272, %v274, %v270
    %v276 = vmul.f32 1.0, %v275
    %v277 = vrcp.pop %v163
    %v278 = vmul.f32 %v163, %v277
    %v279 = vsub.f32 1.0, %v278
    %v280 = vmul.f32 %v277, %v279
    %v281 = vadd.f32 %v277, %v280
    %vm282 = vweird.f32 %v163
    %vm283 = vweird.f32 %v277
    %vm284 = vmor %vm282, %vm283
    %v285 = vsel %vm284, %v277, %v281
    %v286 = vand.u32 2147483647, %v163
    %vm287 = vcmp.eq.f32.partialorder %v286, 8.507059e+37
    %v288 = vand.u32 %v163, 2147483648
    %v289 = vor.u32 1.1754944e-38, %v288
    %v290 = vsel %vm287, %v289, %v285
    %v291 = vmul.f32 1.0, %v290
    %v292 = vrcp.pop %v164
    %v293 = vmul.f32 %v164, %v292
    %v294 = vsub.f32 1.0, %v293
    %v295 = vmul.f32 %v292, %v294
    %v296 = vadd.f32 %v292, %v295
    %vm297 = vweird.f32 %v164
    %vm298 = vweird.f32 %v292
    %vm299 = vmor %vm297, %vm298
    %v300 = vsel %vm299, %v292, %v296
    %v301 = vand.u32 2147483647, %v164
    %vm302 = vcmp.eq.f32.partialorder %v301, 8.507059e+37
    %v303 = vand.u32 %v164, 2147483648
    %v304 = vor.u32 1.1754944e-38, %v303
    %v305 = vsel %vm302, %v304, %v300
    %v306 = vmul.f32 1.0, %v305
    %v307 = vrcp.pop %v165
    %v308 = vmul.f32 %v165, %v307
    %v309 = vsub.f32 1.0, %v308
    %v310 = vmul.f32 %v307, %v309
    %v311 = vadd.f32 %v307, %v310
    %vm312 = vweird.f32 %v165
    %vm313 = vweird.f32 %v307
    %vm314 = vmor %vm312, %vm313
    %v315 = vsel %vm314, %v307, %v311
    %v316 = vand.u32 2147483647, %v165
    %vm317 = vcmp.eq.f32.partialorder %v316, 8.507059e+37
    %v318 = vand.u32 %v165, 2147483648
    %v319 = vor.u32 1.1754944e-38, %v318
    %v320 = vsel %vm317, %v319, %v315
    %v321 = vmul.f32 1.0, %v320
    %v322 = vrcp.pop %v166
    %v323 = vmul.f32 %v166, %v322
    %v324 = vsub.f32 1.0, %v323
    %v325 = vmul.f32 %v322, %v324
    %v326 = vadd.f32 %v322, %v325
    %vm327 = vweird.f32 %v166
    %vm328 = vweird.f32 %v322
    %vm329 = vmor %vm327, %vm328
    %v330 = vsel %vm329, %v322, %v326
    %v331 = vand.u32 2147483647, %v166
    %vm332 = vcmp.eq.f32.partialorder %v331, 8.507059e+37
    %v333 = vand.u32 %v166, 2147483648
    %v334 = vor.u32 1.1754944e-38, %v333
    %v335 = vsel %vm332, %v334, %v330
    %v336 = vmul.f32 1.0, %v335
    %v337 = vrcp.pop %v167
    %v338 = vmul.f32 %v167, %v337
    %v339 = vsub.f32 1.0, %v338
    %v340 = vmul.f32 %v337, %v339
    %v341 = vadd.f32 %v337, %v340
    %vm342 = vweird.f32 %v167
    %vm343 = vweird.f32 %v337
    %vm344 = vmor %vm342, %vm343
    %v345 = vsel %vm344, %v337, %v341
    %v346 = vand.u32 2147483647, %v167
    %vm347 = vcmp.eq.f32.partialorder %v346, 8.507059e+37
    %v348 = vand.u32 %v167, 2147483648
    %v349 = vor.u32 1.1754944e-38, %v348
    %v350 = vsel %vm347, %v349, %v345
    %v351 = vmul.f32 1.0, %v350
    %v352 = vrcp.pop %v168
    %v353 = vmul.f32 %v168, %v352
    %v354 = vsub.f32 1.0, %v353
    %v355 = vmul.f32 %v352, %v354
    %v356 = vadd.f32 %v352, %v355
    %vm357 = vweird.f32 %v168
    %vm358 = vweird.f32 %v352
    %vm359 = vmor %vm357, %vm358
    %v360 = vsel %vm359, %v352, %v356
    %v361 = vand.u32 2147483647, %v168
    %vm362 = vcmp.eq.f32.partialorder %v361, 8.507059e+37
    %v363 = vand.u32 %v168, 2147483648
    %v364 = vor.u32 1.1754944e-38, %v363
    %v365 = vsel %vm362, %v364, %v360
    %v366 = vmul.f32 1.0, %v365
    %v367 = vrcp.pop %v169
    %v368 = vmul.f32 %v169, %v367
    %v369 = vsub.f32 1.0, %v368
    %v370 = vmul.f32 %v367, %v369
    %v371 = vadd.f32 %v367, %v370
    %vm372 = vweird.f32 %v169
    %vm373 = vweird.f32 %v367
    %vm374 = vmor %vm372, %vm373
    %v375 = vsel %vm374, %v367, %v371
    %v376 = vand.u32 2147483647, %v169
    %vm377 = vcmp.eq.f32.partialorder %v376, 8.507059e+37
    %v378 = vand.u32 %v169, 2147483648
    %v379 = vor.u32 1.1754944e-38, %v378
    %v380 = vsel %vm377, %v379, %v375
    %v381 = vmul.f32 1.0, %v380
    %v382 = vrcp.pop %v170
    %v383 = vmul.f32 %v170, %v382
    %v384 = vsub.f32 1.0, %v383
    %v385 = vmul.f32 %v382, %v384
    %v386 = vadd.f32 %v382, %v385
    %vm387 = vweird.f32 %v170
    %vm388 = vweird.f32 %v382
    %vm389 = vmor %vm387, %vm388
    %v390 = vsel %vm389, %v382, %v386
    %v391 = vand.u32 2147483647, %v170
    %vm392 = vcmp.eq.f32.partialorder %v391, 8.507059e+37
    %v393 = vand.u32 %v170, 2147483648
    %v394 = vor.u32 1.1754944e-38, %v393
    %v395 = vsel %vm392, %v394, %v390
    %v396 = vmul.f32 1.0, %v395
    %v397 = vrcp.pop %v171
    %v398 = vmul.f32 %v171, %v397
    %v399 = vsub.f32 1.0, %v398
    %v400 = vmul.f32 %v397, %v399
    %v401 = vadd.f32 %v397, %v400
    %vm402 = vweird.f32 %v171
    %vm403 = vweird.f32 %v397
    %vm404 = vmor %vm402, %vm403
    %v405 = vsel %vm404, %v397, %v401
    %v406 = vand.u32 2147483647, %v171
    %vm407 = vcmp.eq.f32.partialorder %v406, 8.507059e+37
    %v408 = vand.u32 %v171, 2147483648
    %v409 = vor.u32 1.1754944e-38, %v408
    %v410 = vsel %vm407, %v409, %v405
    %v411 = vmul.f32 1.0, %v410
    %v412 = vmul.f32 %v125, %v186
    %v413 = vmul.f32 %v127, %v201
    %v414 = vmul.f32 %v129, %v216
    %v415 = vmul.f32 %v131, %v231
    %v416 = vmul.f32 %v133, %v246
    %v417 = vmul.f32 %v135, %v261
    %v418 = vmul.f32 %v137, %v276
    %v419 = vmul.f32 %v139, %v291
    %v420 = vmul.f32 %v141, %v306
    %v421 = vmul.f32 %v143, %v321
    %v422 = vmul.f32 %v145, %v336
    %v423 = vmul.f32 %v147, %v351
    %v424 = vmul.f32 %v149, %v366
    %v425 = vmul.f32 %v151, %v381
    %v426 = vmul.f32 %v153, %v396
    %v427 = vmul.f32 %v155, %v411
    %v428 = vadd.f32 %v412, 0.05
    %v429 = vadd.f32 %v413, 0.05
    %v430 = vadd.f32 %v414, 0.05
    %v431 = vadd.f32 %v415, 0.05
    %v432 = vadd.f32 %v416, 0.05
    %v433 = vadd.f32 %v417, 0.05
    %v434 = vadd.f32 %v418, 0.05
    %v435 = vadd.f32 %v419, 0.05
    %v436 = vadd.f32 %v420, 0.05
    %v437 = vadd.f32 %v421, 0.05
    %v438 = vadd.f32 %v422, 0.05
    %v439 = vadd.f32 %v423, 0.05
    %v440 = vadd.f32 %v424, 0.05
    %v441 = vadd.f32 %v425, 0.05
    %v442 = vadd.f32 %v426, 0.05
    %v443 = vadd.f32 %v427, 0.05
    %v444 = vmin.f32 %v428, 1.0
    %v445 = vmin.f32 %v429, 1.0
    %v446 = vmin.f32 %v430, 1.0
    %v447 = vmin.f32 %v431, 1.0
    %v448 = vmin.f32 %v432, 1.0
    %v449 = vmin.f32 %v433, 1.0
    %v450 = vmin.f32 %v434, 1.0
    %v451 = vmin.f32 %v435, 1.0
    %v452 = vmin.f32 %v436, 1.0
    %v453 = vmin.f32 %v437, 1.0
    %v454 = vmin.f32 %v438, 1.0
    %v455 = vmin.f32 %v439, 1.0
    %v456 = vmin.f32 %v440, 1.0
    %v457 = vmin.f32 %v441, 1.0
    %v458 = vmin.f32 %v442, 1.0
    %v459 = vmin.f32 %v443, 1.0
    %v460 = vsel %vm76, %v186, %v444
    %v461 = vsel %vm77, %v201, %v445
    %v462 = vsel %vm78, %v216, %v446
    %v463 = vsel %vm79, %v231, %v447
    %v464 = vsel %vm80, %v246, %v448
    %v465 = vsel %vm81, %v261, %v449
    %v466 = vsel %vm82, %v276, %v450
    %v467 = vsel %vm83, %v291, %v451
    %v468 = vsel %vm84, %v306, %v452
    %v469 = vsel %vm85, %v321, %v453
    %v470 = vsel %vm86, %v336, %v454
    %v471 = vsel %vm87, %v351, %v455
    %v472 = vsel %vm88, %v366, %v456
    %v473 = vsel %vm89, %v381, %v457
    %v474 = vsel %vm90, %v396, %v458
    %v475 = vsel %vm91, %v411, %v459
    %v476 = vmax.f32 %v460, 1e-08
    %v477 = vmax.f32 %v461, 1e-08
    %v478 = vmax.f32 %v462, 1e-08
    %v479 = vmax.f32 %v463, 1e-08
    %v480 = vmax.f32 %v464, 1e-08
    %v481 = vmax.f32 %v465, 1e-08
    %v482 = vmax.f32 %v466, 1e-08
    %v483 = vmax.f32 %v467, 1e-08
    %v484 = vmax.f32 %v468, 1e-08
    %v485 = vmax.f32 %v469, 1e-08
    %v486 = vmax.f32 %v470, 1e-08
    %v487 = vmax.f32 %v471, 1e-08
    %v488 = vmax.f32 %v472, 1e-08
    %v489 = vmax.f32 %v473, 1e-08
    %v490 = vmax.f32 %v474, 1e-08
    %v491 = vmax.f32 %v475, 1e-08
    %v492 = vmin.f32 %v476, 1.0
    %v493 = vmin.f32 %v477, 1.0
    %v494 = vmin.f32 %v478, 1.0
    %v495 = vmin.f32 %v479, 1.0
    %v496 = vmin.f32 %v480, 1.0
    %v497 = vmin.f32 %v481, 1.0
    %v498 = vmin.f32 %v482, 1.0
    %v499 = vmin.f32 %v483, 1.0
    %v500 = vmin.f32 %v484, 1.0
    %v501 = vmin.f32 %v485, 1.0
    %v502 = vmin.f32 %v486, 1.0
    %v503 = vmin.f32 %v487, 1.0
    %v504 = vmin.f32 %v488, 1.0
    %v505 = vmin.f32 %v489, 1.0
    %v506 = vmin.f32 %v490, 1.0
    %v507 = vmin.f32 %v491, 1.0
    %v508 = vlog2.pop %v492
    %v509 = vmul.f32 %v508, 0.6931472
    %v510 = vlog2.pop %v493
    %v511 = vmul.f32 %v510, 0.6931472
    %v512 = vlog2.pop %v494
    %v513 = vmul.f32 %v512, 0.6931472
    %v514 = vlog2.pop %v495
    %v515 = vmul.f32 %v514, 0.6931472
    %v516 = vlog2.pop %v496
    %v517 = vmul.f32 %v516, 0.6931472
    %v518 = vlog2.pop %v497
    %v519 = vmul.f32 %v518, 0.6931472
    %v520 = vlog2.pop %v498
    %v521 = vmul.f32 %v520, 0.6931472
    %v522 = vlog2.pop %v499
    %v523 = vmul.f32 %v522, 0.6931472
    %v524 = vlog2.pop %v500
    %v525 = vmul.f32 %v524, 0.6931472
    %v526 = vlog2.pop %v501
    %v527 = vmul.f32 %v526, 0.6931472
    %v528 = vlog2.pop %v502
    %v529 = vmul.f32 %v528, 0.6931472
    %v530 = vlog2.pop %v503
    %v531 = vmul.f32 %v530, 0.6931472
    %v532 = vlog2.pop %v504
    %v533 = vmul.f32 %v532, 0.6931472
    %v534 = vlog2.pop %v505
    %v535 = vmul.f32 %v534, 0.6931472
    %v536 = vlog2.pop %v506
    %v537 = vmul.f32 %v536, 0.6931472
    %v538 = vlog2.pop %v507
    %v539 = vmul.f32 %v538, 0.6931472
    %v540 = vsub.f32 1.0, %v460
    %v541 = vsub.f32 1.0, %v461
    %v542 = vsub.f32 1.0, %v462
    %v543 = vsub.f32 1.0, %v463
    %v544 = vsub.f32 1.0, %v464
    %v545 = vsub.f32 1.0, %v465
    %v546 = vsub.f32 1.0, %v466
    %v547 = vsub.f32 1.0, %v467
    %v548 = vsub.f32 1.0, %v468
    %v549 = vsub.f32 1.0, %v469
    %v550 = vsub.f32 1.0, %v470
    %v551 = vsub.f32 1.0, %v471
    %v552 = vsub.f32 1.0, %v472
    %v553 = vsub.f32 1.0, %v473
    %v554 = vsub.f32 1.0, %v474
    %v555 = vsub.f32 1.0, %v475
    %v556 = vmul.f32 %v540, %v540
    %v557 = vmul.f32 %v541, %v541
    %v558 = vmul.f32 %v542, %v542
    %v559 = vmul.f32 %v543, %v543
    %v560 = vmul.f32 %v544, %v544
    %v561 = vmul.f32 %v545, %v545
    %v562 = vmul.f32 %v546, %v546
    %v563 = vmul.f32 %v547, %v547
    %v564 = vmul.f32 %v548, %v548
    %v565 = vmul.f32 %v549, %v549
    %v566 = vmul.f32 %v550, %v550
    %v567 = vmul.f32 %v551, %v551
    %v568 = vmul.f32 %v552, %v552
    %v569 = vmul.f32 %v553, %v553
    %v570 = vmul.f32 %v554, %v554
    %v571 = vmul.f32 %v555, %v555
    %v572 = vmul.f32 %v556, %v556
    %v573 = vmul.f32 %v557, %v557
    %v574 = vmul.f32 %v558, %v558
    %v575 = vmul.f32 %v559, %v559
    %v576 = vmul.f32 %v560, %v560
    %v577 = vmul.f32 %v561, %v561
    %v578 = vmul.f32 %v562, %v562
    %v579 = vmul.f32 %v563, %v563
    %v580 = vmul.f32 %v564, %v564
    %v581 = vmul.f32 %v565, %v565
    %v582 = vmul.f32 %v566, %v566
    %v583 = vmul.f32 %v567, %v567
    %v584 = vmul.f32 %v568, %v568
    %v585 = vmul.f32 %v569, %v569
    %v586 = vmul.f32 %v570, %v570
    %v587 = vmul.f32 %v571, %v571
    %v588 = vsel %vm76, %v540, %v572
    %v589 = vsel %vm77, %v541, %v573
    %v590 = vsel %vm78, %v542, %v574
    %v591 = vsel %vm79, %v543, %v575
    %v592 = vsel %vm80, %v544, %v576
    %v593 = vsel %vm81, %v545, %v577
    %v594 = vsel %vm82, %v546, %v578
    %v595 = vsel %vm83, %v547, %v579
    %v596 = vsel %vm84, %v548, %v580
    %v597 = vsel %vm85, %v549, %v581
    %v598 = vsel %vm86, %v550, %v582
    %v599 = vsel %vm87, %v551, %v583
    %v600 = vsel %vm88, %v552, %v584
    %v601 = vsel %vm89, %v553, %v585
    %v602 = vsel %vm90, %v554, %v586
    %v603 = vsel %vm91, %v555, %v587
    %v604 = vmul.f32 %v509, %v588
    %v605 = vmul.f32 %v511, %v589
    %v606 = vmul.f32 %v513, %v590
    %v607 = vmul.f32 %v515, %v591
    %v608 = vmul.f32 %v517, %v592
    %v609 = vmul.f32 %v519, %v593
    %v610 = vmul.f32 %v521, %v594
    %v611 = vmul.f32 %v523, %v595
    %v612 = vmul.f32 %v525, %v596
    %v613 = vmul.f32 %v527, %v597
    %v614 = vmul.f32 %v529, %v598
    %v615 = vmul.f32 %v531, %v599
    %v616 = vmul.f32 %v533, %v600
    %v617 = vmul.f32 %v535, %v601
    %v618 = vmul.f32 %v537, %v602
    %v619 = vmul.f32 %v539, %v603
    %s620 = smul.u32 0, 32
    %v621 = vlaneseq
    %v622 = vshrl.u32 %v621, 7
    %v623 = vadd.s32 %v622, 8
    %v624 = vadd.s32 %v622, 16
    %v625 = vadd.s32 %v622, 24
    %v626 = vstv %s620
    %v627 = vadd.s32 %v626, %v622
    %v628 = vadd.s32 %v626, %v623
    %v629 = vadd.s32 %v626, %v624
    %v630 = vadd.s32 %v626, %v625
    %v631 = vlaneseq
    %v632 = vand.u32 %v631, 127
    %v633 = vadd.s32 %v632, 128
    %v634 = vadd.s32 %v632, 256
    %v635 = vadd.s32 %v632, 384
    %vm636 = vcmp.lt.s32.totalorder %v627, 10
    %vm637 = vcmp.lt.s32.totalorder %v628, 10
    %vm638 = vcmp.lt.s32.totalorder %v629, 10
    %vm639 = vcmp.lt.s32.totalorder %v630, 10
    %vm640 = vcmp.eq.s32.totalorder %v627, 10
    %vm641 = vcmp.eq.s32.totalorder %v628, 10
    %vm642 = vcmp.eq.s32.totalorder %v629, 10
    %vm643 = vcmp.eq.s32.totalorder %v630, 10
    %vm644 = vcmp.lt.s32.totalorder %v632, 0
    %vm645 = vcmp.lt.s32.totalorder %v633, 0
    %vm646 = vcmp.lt.s32.totalorder %v634, 0
    %vm647 = vcmp.lt.s32.totalorder %v635, 0
    %vm648 = vmand %vm640, %vm644
    %vm649 = vmand %vm640, %vm645
    %vm650 = vmand %vm640, %vm646
    %vm651 = vmand %vm640, %vm647
    %vm652 = vmand %vm641, %vm644
    %vm653 = vmand %vm641, %vm645
    %vm654 = vmand %vm641, %vm646
    %vm655 = vmand %vm641, %vm647
    %vm656 = vmand %vm642, %vm644
    %vm657 = vmand %vm642, %vm645
    %vm658 = vmand %vm642, %vm646
    %vm659 = vmand %vm642, %vm647
    %vm660 = vmand %vm643, %vm644
    %vm661 = vmand %vm643, %vm645
    %vm662 = vmand %vm643, %vm646
    %vm663 = vmand %vm643, %vm647
    %vm664 = vmor %vm636, %vm648
    %vm665 = vmor %vm636, %vm649
    %vm666 = vmor %vm636, %vm650
    %vm667 = vmor %vm636, %vm651
    %vm668 = vmor %vm637, %vm652
    %vm669 = vmor %vm637, %vm653
    %vm670 = vmor %vm637, %vm654
    %vm671 = vmor %vm637, %vm655
    %vm672 = vmor %vm638, %vm656
    %vm673 = vmor %vm638, %vm657
    %vm674 = vmor %vm638, %vm658
    %vm675 = vmor %vm638, %vm659
    %vm676 = vmor %vm639, %vm660
    %vm677 = vmor %vm639, %vm661
    %vm678 = vmor %vm639, %vm662
    %vm679 = vmor %vm639, %vm663
    %v680 = vsel %vm664, %v604, 0.0
    %v681 = vsel %vm665, %v605, 0.0
    %v682 = vsel %vm666, %v606, 0.0
    %v683 = vsel %vm667, %v607, 0.0
    %v684 = vsel %vm668, %v608, 0.0
    %v685 = vsel %vm669, %v609, 0.0
    %v686 = vsel %vm670, %v610, 0.0
    %v687 = vsel %vm671, %v611, 0.0
    %v688 = vsel %vm672, %v612, 0.0
    %v689 = vsel %vm673, %v613, 0.0
    %v690 = vsel %vm674, %v614, 0.0
    %v691 = vsel %vm675, %v615, 0.0
    %v692 = vsel %vm676, %v616, 0.0
    %v693 = vsel %vm677, %v617, 0.0
    %v694 = vsel %vm678, %v618, 0.0
    %v695 = vsel %vm679, %v619, 0.0
    %v696 = vadd.f32 %v680, %v684
    %v697 = vadd.f32 %v696, %v688
    %v698 = vadd.f32 %v697, %v692
    %v699 = vadd.f32 %v681, %v685
    %v700 = vadd.f32 %v699, %v689
    %v701 = vadd.f32 %v700, %v693
    %v702 = vadd.f32 %v682, %v686
    %v703 = vadd.f32 %v702, %v690
    %v704 = vadd.f32 %v703, %v694
    %v705 = vadd.f32 %v683, %v687
    %v706 = vadd.f32 %v705, %v691
    %v707 = vadd.f32 %v706, %v695
    %708 = vst [vmem:[#allocation7] sm:$0xff] %v698
    %709 = vst [vmem:[#allocation7 + $0x8] sm:$0xff] %v701
    %710 = vst [vmem:[#allocation7 + $0x10] sm:$0xff] %v704
    %711 = vst [vmem:[#allocation7 + $0x18] sm:$0xff] %v707
    // Predicated region
    $region18: #{tpu_custom_call.1} parent=1 // pred_check
      _
    $region19: #{tpu_custom_call.1} parent=1 // pred_check_branch
      %713 = sbr.rel (0) target = $region21
    $region20: #{tpu_custom_call.1} parent=1 // pred_region
      %715 = vsyncadd [#allocation4], 0
      %s717 = sshll.u32 [#allocation7], 4
      %s718 = int_to_ptr.vmem [resolvable:$true] %s717
      %s719 = sshll.u32 %s2, 4
      %s720 = int_to_ptr.hbm [resolvable:$true] %s719
      %722 = dma.vmem_to_hbm [thread:$0]  %s718, 512, %s720, [#allocation4]
    $region21: #{tpu_custom_call.1} parent=1 // pred_fallthru
      _
    // Predicated region
    $region22: #{tpu_custom_call.1} parent=1 // pred_check
      _
    $region23: #{tpu_custom_call.1} parent=1 // pred_check_branch
      %724 = sbr.rel (0) target = $region25
    $region24: #{tpu_custom_call.1} parent=1 // pred_region
      %726 = dma.done [#allocation4], 512
    $region25: #{tpu_custom_call.1} parent=1 // pred_fallthru
      _
    %727 = vsyncpa [#allocation3], 1
    %728 = vsyncpa [#allocation6], 1
    %729 = vsyncpa [#allocation4], 1

</llo_original>
